<compile_context>
chip_gen: v7x
topology: tpu7x:2x2x1
jax: 0.10.0
libtpu: 0.0.40
codegen_flags: <defaults>
</compile_context>

<pallas_src>
import functools

import jax
import jax.numpy as jnp
from jax.experimental import pallas as pl
from jax.experimental.pallas import tpu as pltpu


def _n3_kernel(*refs, n_factors, steps_total, steps_per_split, tile_rows,
               n_rows, scale, need_mask):
    x_refs = refs[:n_factors]
    out_ref = refs[n_factors]
    acc_ref = refs[n_factors + 1]

    p = pl.program_id(0)          # core / row-range split (parallel)
    i = pl.program_id(1)          # reduction step within the split (arbitrary)
    step = p * steps_per_split + i

    @pl.when(i == 0)
    def _():
        acc_ref[...] = jnp.zeros_like(acc_ref)

    def accumulate(apply_mask):
        if apply_mask:
            row = (step * tile_rows
                   + jax.lax.broadcasted_iota(jnp.int32, (tile_rows, 1), 0))
            valid = row < n_rows                       # (tile_rows, 1)
        part = jnp.zeros(acc_ref.shape, jnp.float32)
        for r in x_refs:
            x = r[...].astype(jnp.float32)
            t = x * x * jnp.abs(x)                     # |x|**3 (bit-exact abs)
            if apply_mask:
                t = jnp.where(valid, t, 0.0)           # zero padded rows
            part = part + jnp.sum(t, axis=0, keepdims=True)
        acc_ref[...] = acc_ref[...] + part

    if need_mask:
        # Mask only on the final real tile; all other tiles stay unmasked.
        @pl.when(step < steps_total - 1)
        def _():
            accumulate(False)

        @pl.when(step == steps_total - 1)
        def _():
            accumulate(True)
    else:
        # Guard against duplicate tail steps (clamped index_map) when the
        # reduction steps don't divide evenly across splits.
        @pl.when(step < steps_total)
        def _():
            accumulate(False)

    @pl.when(i == steps_per_split - 1)
    def _():
        # One cross-lane reduce + scale fold per split, then a lane-dense store.
        total = jnp.sum(acc_ref[...]) * jnp.float32(scale)
        out_ref[...] = jnp.full(out_ref.shape, total, dtype=out_ref.dtype)


def _pick_tile(n_rows, n_cols, itemsize, n_factors, block_rows):
    if block_rows is not None:
        tile = max(8, (int(block_rows) // 8) * 8)
    else:
        budget = 24 * 1024 * 1024            # all double-buffered input blocks
        max_block = 8 * 1024 * 1024          # cap per block
        row_bytes = max(1, n_cols * itemsize)
        per_block = min(max_block, max(8 * row_bytes, budget // (2 * n_factors)))
        tile = max(8, (per_block // row_bytes) // 8 * 8)
    if tile >= n_rows:
        tile = n_rows                        # single full-height block, no mask
    return tile


def _n3_group_sum(factors, scale, block_rows=None):
    """scale * sum_f sum(|f|**3) for same-shape/dtype factors, one fused call."""
    n_factors = len(factors)
    f0 = factors[0]
    n_rows, n_cols = f0.shape
    itemsize = jnp.dtype(f0.dtype).itemsize

    tile = _pick_tile(n_rows, n_cols, itemsize, n_factors, block_rows)
    steps_total = pl.cdiv(n_rows, tile)
    need_mask = steps_total * tile != n_rows

    # Split rows across (up to) two TensorCores; ~2x on v7x, free elsewhere.
    num_splits = 2 if steps_total >= 2 else 1
    steps_per_split = pl.cdiv(steps_total, num_splits)

    if num_splits * steps_per_split == steps_total:
        def in_map(p, i):
            return (p * steps_per_split + i, 0)
    else:
        def in_map(p, i):
            # Clamp so duplicate tail steps re-read an in-bounds block
            # (they are skipped inside the kernel).
            return (jnp.minimum(p * steps_per_split + i, steps_total - 1), 0)

    kernel = functools.partial(
        _n3_kernel,
        n_factors=n_factors,
        steps_total=steps_total,
        steps_per_split=steps_per_split,
        tile_rows=tile,
        n_rows=n_rows,
        scale=float(scale),
        need_mask=need_mask,
    )

    n_elems = n_rows * n_cols * n_factors
    cost = pl.CostEstimate(
        flops=5 * n_elems,                               # abs, 2 muls, ~2 adds
        transcendentals=0,
        bytes_accessed=n_elems * itemsize + num_splits * 8 * 128 * 4,
    )

    out = pl.pallas_call(
        kernel,
        out_shape=jax.ShapeDtypeStruct((num_splits, 8, 128), jnp.float32),
        grid=(num_splits, steps_per_split),
        in_specs=[pl.BlockSpec((tile, n_cols), in_map) for _ in range(n_factors)],
        out_specs=pl.BlockSpec((1, 8, 128), lambda p, i: (p, 0, 0)),
        scratch_shapes=[pltpu.VMEM((1, n_cols), jnp.float32)],
        compiler_params=pltpu.CompilerParams(
            dimension_semantics=("parallel", "arbitrary"),
            vmem_limit_bytes=48 * 1024 * 1024,
        ),
        cost_estimate=cost,
    )(*factors)

    # Each split wrote its (already scaled) partial broadcast across its block.
    return jnp.sum(out[:, 0, 0])


def n3_forward(factors, weight, block_rows=None):
    """Pallas implementation of N3.forward(factors).

    factors: tuple of arrays whose leading dim is the batch; weight: float.
    returns: scalar f32 = weight * sum_f sum(|f|^3) / factors[0].shape[0]
    """
    denom = factors[0].shape[0]
    scale = float(weight) / float(denom)

    mats = []
    for f in factors:
        if f.ndim != 2:
            f = f.reshape(f.shape[0], -1)
        mats.append(f)

    # Fuse factors that share shape+dtype into a single pallas_call.
    groups = {}
    for f in mats:
        key = (f.shape, str(f.dtype))
        groups.setdefault(key, []).append(f)

    total = jnp.float32(0.0)
    for fs in groups.values():
        total = total + _n3_group_sum(tuple(fs), scale, block_rows=block_rows)
    return total


def _n3_ref(factors, weight):
    # Pure-JAX reference mirroring the PyTorch N3.forward line-for-line.
    norm = 0.0
    for f in factors:
        norm = norm + weight * jnp.sum(jnp.abs(f.astype(jnp.float32)) ** 3)
    return norm / factors[0].shape[0]


if __name__ == "__main__":
    key = jax.random.PRNGKey(0)
    k1, k2, k3 = jax.random.split(key, 3)

    B = 40        # batch of (lhs, rel, rhs) triples (not tile-divisible)
    R = 256       # embedding rank (lane-dense: multiple of 128)
    weight = 0.01

    lhs = jax.random.normal(k1, (B, R), dtype=jnp.float32)
    rel = jax.random.normal(k2, (B, R), dtype=jnp.float32)
    rhs = jax.random.normal(k3, (B, R), dtype=jnp.float32)
    factors = (lhs, rel, rhs)

    ref = _n3_ref(factors, weight)

    # Path 1: tiny forced tile -> exercises grid + core-split + ragged mask.
    out_small = jax.block_until_ready(n3_forward(factors, weight, block_rows=16))
    assert jnp.allclose(out_small, ref, rtol=1e-4, atol=1e-5), (out_small, ref)

    # Path 2: default auto-sized tile -> single full-height block, no mask.
    out_auto = jax.block_until_ready(n3_forward(factors, weight))
    assert jnp.allclose(out_auto, ref, rtol=1e-4, atol=1e-5), (out_auto, ref)

    print("KERNEL_OK")
</pallas_src>

<mosaic_0001>
module attributes {stable_mosaic.version = 11 : i64} {
  func.func @_n3_kernel(%arg0: i32, %arg1: i32, %arg2: memref<16x256xf32, #tpu.memory_space<vmem>>, %arg3: memref<16x256xf32, #tpu.memory_space<vmem>>, %arg4: memref<16x256xf32, #tpu.memory_space<vmem>>, %arg5: memref<1x8x128xf32, #tpu.memory_space<vmem>>, %arg6: memref<1x256xf32, #tpu.memory_space<vmem>>) attributes {dimension_semantics = [#tpu.dimension_semantics<parallel>, #tpu.dimension_semantics<arbitrary>], iteration_bounds = array<i64: 2, 2>, scalar_prefetch = 0 : i64, scratch_operands = 1 : i64, tpu.core_type = #tpu.core_type<tc>, window_params = [{transform_indices = @transform_0, window_bounds = array<i64: 16, 256>}, {transform_indices = @transform_1, window_bounds = array<i64: 16, 256>}, {transform_indices = @transform_2, window_bounds = array<i64: 16, 256>}, {transform_indices = @transform_3, window_bounds = array<i64: 1, 8, 128>}]} {
    %c2_i32 = arith.constant 2 : i32
    %0 = arith.muli %arg0, %c2_i32 : i32
    %1 = arith.addi %0, %arg1 : i32
    %c0_i32 = arith.constant 0 : i32
    %2 = arith.cmpi eq, %arg1, %c0_i32 : i32
    %3 = arith.extui %2 : i1 to i32
    %c0_i32_0 = arith.constant 0 : i32
    %4 = arith.cmpi ne, %3, %c0_i32_0 : i32
    scf.if %4 {
      %cst = arith.constant 0.000000e+00 : f32
      %14 = vector.broadcast %cst : f32 to vector<1x256xf32>
      %c0 = arith.constant 0 : index
      %c0_6 = arith.constant 0 : index
      %15 = vector.load %arg6[%c0, %c0_6] : memref<1x256xf32, #tpu.memory_space<vmem>>, vector<1x256xf32>
      tpu.vector_store %arg6[%c0, %c0_6], %14 {strides = array<i32>} : memref<1x256xf32, #tpu.memory_space<vmem>>, vector<1x256xf32>,
    } else {
    }
    %c2_i32_1 = arith.constant 2 : i32
    %5 = arith.cmpi slt, %1, %c2_i32_1 : i32
    %6 = arith.extui %5 : i1 to i32
    %c0_i32_2 = arith.constant 0 : i32
    %7 = arith.cmpi ne, %6, %c0_i32_2 : i32
    scf.if %7 {
      %cst = arith.constant 0.000000e+00 : f32
      %14 = vector.broadcast %cst : f32 to vector<1x256xf32>
      %c0 = arith.constant 0 : index
      %c0_6 = arith.constant 0 : index
      %15 = vector.load %arg2[%c0, %c0_6] : memref<16x256xf32, #tpu.memory_space<vmem>>, vector<16x256xf32>
      %16 = arith.mulf %15, %15 : vector<16x256xf32>
      %17 = math.absf %15 : vector<16x256xf32>
      %18 = arith.mulf %16, %17 : vector<16x256xf32>
      %cst_7 = arith.constant dense<0.000000e+00> : vector<256xf32>
      %19 = vector.multi_reduction <add>, %18, %cst_7 [0] : vector<16x256xf32> to vector<256xf32>
      %20 = vector.shape_cast %19 : vector<256xf32> to vector<1x256xf32>
      %21 = arith.addf %14, %20 : vector<1x256xf32>
      %c0_8 = arith.constant 0 : index
      %c0_9 = arith.constant 0 : index
      %22 = vector.load %arg3[%c0_8, %c0_9] : memref<16x256xf32, #tpu.memory_space<vmem>>, vector<16x256xf32>
      %23 = arith.mulf %22, %22 : vector<16x256xf32>
      %24 = math.absf %22 : vector<16x256xf32>
      %25 = arith.mulf %23, %24 : vector<16x256xf32>
      %cst_10 = arith.constant dense<0.000000e+00> : vector<256xf32>
      %26 = vector.multi_reduction <add>, %25, %cst_10 [0] : vector<16x256xf32> to vector<256xf32>
      %27 = vector.shape_cast %26 : vector<256xf32> to vector<1x256xf32>
      %28 = arith.addf %21, %27 : vector<1x256xf32>
      %c0_11 = arith.constant 0 : index
      %c0_12 = arith.constant 0 : index
      %29 = vector.load %arg4[%c0_11, %c0_12] : memref<16x256xf32, #tpu.memory_space<vmem>>, vector<16x256xf32>
      %30 = arith.mulf %29, %29 : vector<16x256xf32>
      %31 = math.absf %29 : vector<16x256xf32>
      %32 = arith.mulf %30, %31 : vector<16x256xf32>
      %cst_13 = arith.constant dense<0.000000e+00> : vector<256xf32>
      %33 = vector.multi_reduction <add>, %32, %cst_13 [0] : vector<16x256xf32> to vector<256xf32>
      %34 = vector.shape_cast %33 : vector<256xf32> to vector<1x256xf32>
      %35 = arith.addf %28, %34 : vector<1x256xf32>
      %c0_14 = arith.constant 0 : index
      %c0_15 = arith.constant 0 : index
      %36 = vector.load %arg6[%c0_14, %c0_15] : memref<1x256xf32, #tpu.memory_space<vmem>>, vector<1x256xf32>
      %37 = arith.addf %36, %35 : vector<1x256xf32>
      %c0_16 = arith.constant 0 : index
      %c0_17 = arith.constant 0 : index
      %38 = vector.load %arg6[%c0_16, %c0_17] : memref<1x256xf32, #tpu.memory_space<vmem>>, vector<1x256xf32>
      tpu.vector_store %arg6[%c0_16, %c0_17], %37 {strides = array<i32>} : memref<1x256xf32, #tpu.memory_space<vmem>>, vector<1x256xf32>,
    } else {
    }
    %c2_i32_3 = arith.constant 2 : i32
    %8 = arith.cmpi eq, %1, %c2_i32_3 : i32
    %9 = arith.extui %8 : i1 to i32
    %c0_i32_4 = arith.constant 0 : i32
    %10 = arith.cmpi ne, %9, %c0_i32_4 : i32
    scf.if %10 {
      %c16_i32 = arith.constant 16 : i32
      %14 = arith.muli %1, %c16_i32 : i32
      %15 = tpu.iota {dimensions = array<i32: 0>} : vector<16x1xi32>
      %16 = vector.broadcast %14 : i32 to vector<16x1xi32>
      %17 = arith.addi %16, %15 : vector<16x1xi32>
      %c40_i32 = arith.constant 40 : i32
      %18 = vector.broadcast %c40_i32 : i32 to vector<16x1xi32>
      %19 = arith.cmpi slt, %17, %18 : vector<16x1xi32>
      %cst = arith.constant 0.000000e+00 : f32
      %20 = vector.broadcast %cst : f32 to vector<1x256xf32>
      %c0 = arith.constant 0 : index
      %c0_6 = arith.constant 0 : index
      %21 = vector.load %arg2[%c0, %c0_6] : memref<16x256xf32, #tpu.memory_space<vmem>>, vector<16x256xf32>
      %22 = arith.mulf %21, %21 : vector<16x256xf32>
      %23 = math.absf %21 : vector<16x256xf32>
      %24 = arith.mulf %22, %23 : vector<16x256xf32>
      %cst_7 = arith.constant 0.000000e+00 : f32
      %25 = vector.shape_cast %19 : vector<16x1xi1> to vector<16x1xi1>
      %26 = vector.broadcast %25 : vector<16x1xi1> to vector<16x256xi1>
      %27 = vector.broadcast %cst_7 : f32 to vector<16x256xf32>
      %28 = arith.select %26, %24, %27 : vector<16x256xi1>, vector<16x256xf32>
      %cst_8 = arith.constant dense<0.000000e+00> : vector<256xf32>
      %29 = vector.multi_reduction <add>, %28, %cst_8 [0] : vector<16x256xf32> to vector<256xf32>
      %30 = vector.shape_cast %29 : vector<256xf32> to vector<1x256xf32>
      %31 = arith.addf %20, %30 : vector<1x256xf32>
      %c0_9 = arith.constant 0 : index
      %c0_10 = arith.constant 0 : index
      %32 = vector.load %arg3[%c0_9, %c0_10] : memref<16x256xf32, #tpu.memory_space<vmem>>, vector<16x256xf32>
      %33 = arith.mulf %32, %32 : vector<16x256xf32>
      %34 = math.absf %32 : vector<16x256xf32>
      %35 = arith.mulf %33, %34 : vector<16x256xf32>
      %cst_11 = arith.constant 0.000000e+00 : f32
      %36 = vector.shape_cast %19 : vector<16x1xi1> to vector<16x1xi1>
      %37 = vector.broadcast %36 : vector<16x1xi1> to vector<16x256xi1>
      %38 = vector.broadcast %cst_11 : f32 to vector<16x256xf32>
      %39 = arith.select %37, %35, %38 : vector<16x256xi1>, vector<16x256xf32>
      %cst_12 = arith.constant dense<0.000000e+00> : vector<256xf32>
      %40 = vector.multi_reduction <add>, %39, %cst_12 [0] : vector<16x256xf32> to vector<256xf32>
      %41 = vector.shape_cast %40 : vector<256xf32> to vector<1x256xf32>
      %42 = arith.addf %31, %41 : vector<1x256xf32>
      %c0_13 = arith.constant 0 : index
      %c0_14 = arith.constant 0 : index
      %43 = vector.load %arg4[%c0_13, %c0_14] : memref<16x256xf32, #tpu.memory_space<vmem>>, vector<16x256xf32>
      %44 = arith.mulf %43, %43 : vector<16x256xf32>
      %45 = math.absf %43 : vector<16x256xf32>
      %46 = arith.mulf %44, %45 : vector<16x256xf32>
      %cst_15 = arith.constant 0.000000e+00 : f32
      %47 = vector.shape_cast %19 : vector<16x1xi1> to vector<16x1xi1>
      %48 = vector.broadcast %47 : vector<16x1xi1> to vector<16x256xi1>
      %49 = vector.broadcast %cst_15 : f32 to vector<16x256xf32>
      %50 = arith.select %48, %46, %49 : vector<16x256xi1>, vector<16x256xf32>
      %cst_16 = arith.constant dense<0.000000e+00> : vector<256xf32>
      %51 = vector.multi_reduction <add>, %50, %cst_16 [0] : vector<16x256xf32> to vector<256xf32>
      %52 = vector.shape_cast %51 : vector<256xf32> to vector<1x256xf32>
      %53 = arith.addf %42, %52 : vector<1x256xf32>
      %c0_17 = arith.constant 0 : index
      %c0_18 = arith.constant 0 : index
      %54 = vector.load %arg6[%c0_17, %c0_18] : memref<1x256xf32, #tpu.memory_space<vmem>>, vector<1x256xf32>
      %55 = arith.addf %54, %53 : vector<1x256xf32>
      %c0_19 = arith.constant 0 : index
      %c0_20 = arith.constant 0 : index
      %56 = vector.load %arg6[%c0_19, %c0_20] : memref<1x256xf32, #tpu.memory_space<vmem>>, vector<1x256xf32>
      tpu.vector_store %arg6[%c0_19, %c0_20], %55 {strides = array<i32>} : memref<1x256xf32, #tpu.memory_space<vmem>>, vector<1x256xf32>,
    } else {
    }
    %c1_i32 = arith.constant 1 : i32
    %11 = arith.cmpi eq, %arg1, %c1_i32 : i32
    %12 = arith.extui %11 : i1 to i32
    %c0_i32_5 = arith.constant 0 : i32
    %13 = arith.cmpi ne, %12, %c0_i32_5 : i32
    scf.if %13 {
      %c0 = arith.constant 0 : index
      %c0_6 = arith.constant 0 : index
      %14 = vector.load %arg6[%c0, %c0_6] : memref<1x256xf32, #tpu.memory_space<vmem>>, vector<1x256xf32>
      %15 = vector.shape_cast %14 : vector<1x256xf32> to vector<1x1x256xf32>
      %cst = arith.constant dense<0.000000e+00> : vector<1xf32>
      %16 = vector.multi_reduction <add>, %15, %cst [1, 2] : vector<1x1x256xf32> to vector<1xf32>
      %17 = vector.shape_cast %16 : vector<1xf32> to vector<1x1x1xf32>
      %18 = vector.extract %17[0, 0, 0] : f32 from vector<1x1x1xf32>
      %cst_7 = arith.constant 2.500000e-04 : f32
      %19 = arith.mulf %18, %cst_7 : f32
      %20 = vector.broadcast %19 : f32 to vector<1x8x128xf32>
      %c0_8 = arith.constant 0 : index
      %c0_9 = arith.constant 0 : index
      %c0_10 = arith.constant 0 : index
      %21 = vector.load %arg5[%c0_8, %c0_9, %c0_10] : memref<1x8x128xf32, #tpu.memory_space<vmem>>, vector<1x8x128xf32>
      tpu.vector_store %arg5[%c0_8, %c0_9, %c0_10], %20 {strides = array<i32>} : memref<1x8x128xf32, #tpu.memory_space<vmem>>, vector<1x8x128xf32>,
    } else {
    }
    return
  }
  func.func @transform_0(%arg0: i32, %arg1: i32) -> (i32, i32) {
    %c2_i32 = arith.constant 2 : i32
    %0 = arith.muli %arg0, %c2_i32 : i32
    %1 = arith.addi %0, %arg1 : i32
    %c2_i32_0 = arith.constant 2 : i32
    %2 = arith.minsi %1, %c2_i32_0 : i32
    %c0_i32 = arith.constant 0 : i32
    %c0_i32_1 = arith.constant 0 : i32
    return %2, %c0_i32 : i32, i32
  }
  func.func @transform_1(%arg0: i32, %arg1: i32) -> (i32, i32) {
    %c2_i32 = arith.constant 2 : i32
    %0 = arith.muli %arg0, %c2_i32 : i32
    %1 = arith.addi %0, %arg1 : i32
    %c2_i32_0 = arith.constant 2 : i32
    %2 = arith.minsi %1, %c2_i32_0 : i32
    %c0_i32 = arith.constant 0 : i32
    %c0_i32_1 = arith.constant 0 : i32
    return %2, %c0_i32 : i32, i32
  }
  func.func @transform_2(%arg0: i32, %arg1: i32) -> (i32, i32) {
    %c2_i32 = arith.constant 2 : i32
    %0 = arith.muli %arg0, %c2_i32 : i32
    %1 = arith.addi %0, %arg1 : i32
    %c2_i32_0 = arith.constant 2 : i32
    %2 = arith.minsi %1, %c2_i32_0 : i32
    %c0_i32 = arith.constant 0 : i32
    %c0_i32_1 = arith.constant 0 : i32
    return %2, %c0_i32 : i32, i32
  }
  func.func @transform_3(%arg0: i32, %arg1: i32) -> (i32, i32, i32) {
    %c0_i32 = arith.constant 0 : i32
    %c0_i32_0 = arith.constant 0 : i32
    %c0_i32_1 = arith.constant 0 : i32
    return %arg0, %c0_i32, %c0_i32_0 : i32, i32, i32
  }
}

</mosaic_0001>

<llo_original>
// kernel: tpu_custom_call.1
$region0: #{tpu_custom_call.1}
  #allocation0 [shape = 'u32[]', space=smem, size = 0x4, offset = 0x4, fixed_abs, tag = 'smem constant byte address 0x4 - core index']
  #allocation1 [shape = 'u32[144,128]{1,0:T(1,128)}', space=vmem, size = 0x12000, scoped, tag = 'internal scratch']
  #allocation2 [shape = 'f32[1,256]{1,0:T(1,128)}', space=vmem, size = 0x400, scoped, tag = 'scratch operand']
  %s0 = inlined_call_operand.hbm [shape: f32[40,256], index: 0, kind: input, shape index: {}]
  %s1 = inlined_call_operand.hbm [shape: f32[40,256], index: 1, kind: input, shape index: {}]
  %s2 = inlined_call_operand.hbm [shape: f32[40,256], index: 2, kind: input, shape index: {}]
  %s3 = inlined_call_operand.hbm [shape: f32[2,8,128], index: 3, kind: output, shape index: {}]
  %s4 = sld [smem:[#allocation0]]
  $region73: #{tpu_custom_call.1} parent=0
    _
  %s6 = ssub.s32 1, %s4
  %s7 = scalar_select 0, %s6, %s4
  $region1: #{tpu_custom_call.1} parent=0
    #allocation3 [shape = 'u8[32768]{0}', space=vmem, size = 0x8000, scoped, tag = 'input window, operand 0']
    #allocation4 [shape = 's32[2]{0}', space=sflag, size = 0x8, scoped, tag = 'scoped memory for tpu_custom_call.1']
    #allocation5 [shape = 's32[2]{0}', space=sflag, size = 0x8, scoped, tag = 'scoped memory for tpu_custom_call.1']
    #allocation6 [shape = 'u8[32768]{0}', space=vmem, size = 0x8000, scoped, tag = 'input window, operand 1']
    #allocation7 [shape = 's32[2]{0}', space=sflag, size = 0x8, scoped, tag = 'scoped memory for tpu_custom_call.1']
    #allocation8 [shape = 'u8[32768]{0}', space=vmem, size = 0x8000, scoped, tag = 'input window, operand 2']
    #allocation9 [shape = 'u8[8192]{0}', space=vmem, size = 0x2000, scoped, tag = 'output window, operand 0']
    %8 = vsyncpa [#allocation4], 0
    %s9 = scalar_lea.sflag [#allocation4], 1
    %10 = vsyncpa %s9, 0
    %11 = vsyncpa [#allocation7], 0
    %s12 = scalar_lea.sflag [#allocation7], 1
    %13 = vsyncpa %s12, 0
    %14 = vsyncpa [#allocation5], 0
    %s15 = scalar_lea.sflag [#allocation5], 1
    %16 = vsyncpa %s15, 0
    loop: start=0, step=1, limit=6
    $region2: #{tpu_custom_call.1} parent=1 // loop_pre_header
      _
    $region3: #{tpu_custom_call.1} parent=1 // loop_header
      %s18 = sphi 0, %s22
      %p19 = scmp.ge.s32.totalorder %s18, 6
      %s25 = sphi 0, %s37
      %s26 = sphi 0, %s33
      %s27 = sphi 0, %s25
      %s28 = sphi 0, %s26
      %s29 = sphi 0, %s27
      %s30 = sphi 0, %s28
      %s48 = sphi 0, %s50
      %s51 = sphi 0, %s48
      %s52 = sphi 0, %s51
      %s68 = sphi 0, %s52
      %s82 = sphi 0, %s84
      %s85 = sphi 0, %s82
      %s86 = sphi 0, %s85
      %s102 = sphi 0, %s86
      %s116 = sphi 0, %s118
      %s119 = sphi 0, %s116
      %s120 = sphi 0, %s119
      %s136 = sphi 0, %s120
      %s142 = sphi 0, %s144
      %s145 = sphi 0, %s142
      %s146 = sphi 0, %s145
      %s162 = sphi 0, %s146
    $region4: #{tpu_custom_call.1} parent=1 // loop_header_branch
      %21 = sbr.rel (%p19) target = $region8
    $region5: #{tpu_custom_call.1} parent=1 // loop_body
      %s23 = ssub.s32 %s18, 1
      %s24 = ssub.s32 %s18, 2
      %s31 = sadd.s32 1, %s26
      %p32 = scmp.ge.s32.totalorder %s31, 2
      %s33 = scalar_select %p32, 0, %s31
      %s34 = sadd.s32 1, %s25
      %s35 = scalar_select %p32, %s34, %s25
      %p36 = scmp.ge.s32.totalorder %s35, 2
      %s37 = scalar_select %p36, 0, %s35
      %s38 = smul.u32 %s25, 2
      %s39 = sadd.s32 %s38, %s26
      %p40 = scmp.lt.s32.totalorder %s39, 2
      %s41 = scalar_select %p40, %s39, 2
      %s42 = smul.u32 %s37, 2
      %s43 = sadd.s32 %s42, %s33
      %p44 = scmp.lt.s32.totalorder %s43, 2
      %s45 = scalar_select %p44, %s43, 2
      %s46 = ssub.s32 %s41, %s45
      %p47 = scmp.eq.s32.totalorder %s46, 0
      %s49 = sadd.s32 %s48, 1
      %s50 = scalar_select %p47, %s48, %s49
      %p53 = pneg %p47
      %p54 = scmp.eq.s32.totalorder %s18, 3
      %p55 = por %p53, %p54
      %p56 = scmp.ne.s32.totalorder %s48, %s51
      %p57 = scmp.eq.s32.totalorder %s18, 0
      %p58 = por %p56, %p57
      %p59 = scmp.ne.s32.totalorder %s48, %s51
      %p60 = scmp.eq.s32.totalorder %s23, 3
      %p61 = por %p59, %p60
      %p62 = scmp.ne.s32.totalorder %s51, %s52
      %p63 = scmp.eq.s32.totalorder %s23, 0
      %p64 = por %p62, %p63
      %p65 = scmp.ne.s32.totalorder %s51, %s52
      %p66 = scmp.eq.s32.totalorder %s24, 3
      %p67 = por %p65, %p66
      %p69 = scmp.ne.s32.totalorder %s52, %s68
      %p70 = scmp.eq.s32.totalorder %s24, 0
      %p71 = por %p69, %p70
      %s72 = smul.u32 %s25, 2
      %s73 = sadd.s32 %s72, %s26
      %p74 = scmp.lt.s32.totalorder %s73, 2
      %s75 = scalar_select %p74, %s73, 2
      %s76 = smul.u32 %s37, 2
      %s77 = sadd.s32 %s76, %s33
      %p78 = scmp.lt.s32.totalorder %s77, 2
      %s79 = scalar_select %p78, %s77, 2
      %s80 = ssub.s32 %s75, %s79
      %p81 = scmp.eq.s32.totalorder %s80, 0
      %s83 = sadd.s32 %s82, 1
      %s84 = scalar_select %p81, %s82, %s83
      %p87 = pneg %p81
      %p88 = scmp.eq.s32.totalorder %s18, 3
      %p89 = por %p87, %p88
      %p90 = scmp.ne.s32.totalorder %s82, %s85
      %p91 = scmp.eq.s32.totalorder %s18, 0
      %p92 = por %p90, %p91
      %p93 = scmp.ne.s32.totalorder %s82, %s85
      %p94 = scmp.eq.s32.totalorder %s23, 3
      %p95 = por %p93, %p94
      %p96 = scmp.ne.s32.totalorder %s85, %s86
      %p97 = scmp.eq.s32.totalorder %s23, 0
      %p98 = por %p96, %p97
      %p99 = scmp.ne.s32.totalorder %s85, %s86
      %p100 = scmp.eq.s32.totalorder %s24, 3
      %p101 = por %p99, %p100
      %p103 = scmp.ne.s32.totalorder %s86, %s102
      %p104 = scmp.eq.s32.totalorder %s24, 0
      %p105 = por %p103, %p104
      %s106 = smul.u32 %s25, 2
      %s107 = sadd.s32 %s106, %s26
      %p108 = scmp.lt.s32.totalorder %s107, 2
      %s109 = scalar_select %p108, %s107, 2
      %s110 = smul.u32 %s37, 2
      %s111 = sadd.s32 %s110, %s33
      %p112 = scmp.lt.s32.totalorder %s111, 2
      %s113 = scalar_select %p112, %s111, 2
      %s114 = ssub.s32 %s109, %s113
      %p115 = scmp.eq.s32.totalorder %s114, 0
      %s117 = sadd.s32 %s116, 1
      %s118 = scalar_select %p115, %s116, %s117
      %p121 = pneg %p115
      %p122 = scmp.eq.s32.totalorder %s18, 3
      %p123 = por %p121, %p122
      %p124 = scmp.ne.s32.totalorder %s116, %s119
      %p125 = scmp.eq.s32.totalorder %s18, 0
      %p126 = por %p124, %p125
      %p127 = scmp.ne.s32.totalorder %s116, %s119
      %p128 = scmp.eq.s32.totalorder %s23, 3
      %p129 = por %p127, %p128
      %p130 = scmp.ne.s32.totalorder %s119, %s120
      %p131 = scmp.eq.s32.totalorder %s23, 0
      %p132 = por %p130, %p131
      %p133 = scmp.ne.s32.totalorder %s119, %s120
      %p134 = scmp.eq.s32.totalorder %s24, 3
      %p135 = por %p133, %p134
      %p137 = scmp.ne.s32.totalorder %s120, %s136
      %p138 = scmp.eq.s32.totalorder %s24, 0
      %p139 = por %p137, %p138
      %s140 = ssub.s32 %s25, %s37
      %p141 = scmp.eq.s32.totalorder %s140, 0
      %s143 = sadd.s32 %s142, 1
      %s144 = scalar_select %p141, %s142, %s143
      %p147 = pneg %p141
      %p148 = scmp.eq.s32.totalorder %s18, 3
      %p149 = por %p147, %p148
      %p150 = scmp.ne.s32.totalorder %s142, %s145
      %p151 = scmp.eq.s32.totalorder %s18, 0
      %p152 = por %p150, %p151
      %p153 = scmp.ne.s32.totalorder %s142, %s145
      %p154 = scmp.eq.s32.totalorder %s23, 3
      %p155 = por %p153, %p154
      %p156 = scmp.ne.s32.totalorder %s145, %s146
      %p157 = scmp.eq.s32.totalorder %s23, 0
      %p158 = por %p156, %p157
      %p159 = scmp.ne.s32.totalorder %s145, %s146
      %p160 = scmp.eq.s32.totalorder %s24, 3
      %p161 = por %p159, %p160
      %p163 = scmp.ne.s32.totalorder %s146, %s162
      %p164 = scmp.eq.s32.totalorder %s24, 0
      %p165 = por %p163, %p164
      %p166 = scmp.le.s32.totalorder 1, %s18
      %p167 = scmp.lt.s32.totalorder %s18, 5
      %p168 = pnand %p166, %p167
      %p169 = pneg %p168
      // Predicated region
      $region9: #{tpu_custom_call.1} parent=5 // pred_check
        _
      $region10: #{tpu_custom_call.1} parent=5 // pred_check_branch
        %171 = sbr.rel (%p168) target = $region12
      $region11: #{tpu_custom_call.1} parent=5 // pred_region
        %s172 = ssub.s32 %s18, 1
      $region12: #{tpu_custom_call.1} parent=5 // pred_fallthru
        _
      %p173 = scmp.lt.s32.totalorder %s18, 4
      // Predicated region
      $region13: #{tpu_custom_call.1} parent=5 // pred_check
        %p174 = pneg %p173
      $region14: #{tpu_custom_call.1} parent=5 // pred_check_branch
        %176 = sbr.rel (%p174) target = $region16
      $region15: #{tpu_custom_call.1} parent=5 // pred_region
        // Predicated region
        $region17: #{tpu_custom_call.1} parent=15 // pred_check
          %p177 = pneg %p58
        $region18: #{tpu_custom_call.1} parent=15 // pred_check_branch
          %179 = sbr.rel (%p177) target = $region20
        $region19: #{tpu_custom_call.1} parent=15 // pred_region
          %s180 = sand.u32 %s48, 1
          %s181 = scalar_lea.sflag [#allocation4], %s180
          %s182 = sand.u32 %s48, 1
          %s183 = smul.addr %s182, 32
          %s184 = scalar_lea.vmem [#allocation3], %s183
          %s185 = smul.u32 %s25, 2
          %s186 = sadd.s32 %s185, %s26
          %p187 = scmp.lt.s32.totalorder %s186, 2
          %s188 = scalar_select %p187, %s186, 2
          %s189 = smul.u32 2, %s188
          %s190 = ssub.s32 5, %s189
          %p191 = scmp.lt.s32.totalorder %s190, 2
          %s192 = scalar_select %p191, %s190, 2
          %s193 = smul.u32 128, %s192
          %s194 = smul.u32 %s193, 2
          %s196 = ssub.s32 512, %s194
          %197 = vsyncadd %s181, %s196
          %p198 = scmp.ne.s32.totalorder 0, %s194
          %s199 = smul.addr %s189, 2
          %s200 = smul.addr %s199, 128
          %s201 = scalar_lea.hbm %s0, %s200
          %s202 = smul.u32 16, %s192
          %s203 = sshll.u32 %s184, 4
          %s204 = int_to_ptr.vmem [resolvable:$true] %s203
          %s205 = sshll.u32 %s202, 4
          %209 = dma.hbm_to_vmem [thread:$0]  (%p198), %s201, %s205, %s204, %s181, 256, 256, 16
        $region20: #{tpu_custom_call.1} parent=15 // pred_fallthru
          _
        // Predicated region
        $region21: #{tpu_custom_call.1} parent=15 // pred_check
          %p210 = pneg %p92
        $region22: #{tpu_custom_call.1} parent=15 // pred_check_branch
          %212 = sbr.rel (%p210) target = $region24
        $region23: #{tpu_custom_call.1} parent=15 // pred_region
          %s213 = sand.u32 %s18, 1
          %s214 = scalar_lea.sflag [#allocation7], %s213
          %s215 = sand.u32 %s82, 1
          %s216 = smul.addr %s215, 32
          %s217 = scalar_lea.vmem [#allocation6], %s216
          %s218 = smul.u32 %s25, 2
          %s219 = sadd.s32 %s218, %s26
          %p220 = scmp.lt.s32.totalorder %s219, 2
          %s221 = scalar_select %p220, %s219, 2
          %s222 = smul.u32 2, %s221
          %s223 = ssub.s32 5, %s222
          %p224 = scmp.lt.s32.totalorder %s223, 2
          %s225 = scalar_select %p224, %s223, 2
          %s226 = smul.u32 128, %s225
          %s227 = smul.u32 %s226, 2
          %s229 = ssub.s32 512, %s227
          %230 = vsyncadd %s214, %s229
          %p231 = scmp.ne.s32.totalorder 0, %s227
          %s232 = smul.addr %s222, 2
          %s233 = smul.addr %s232, 128
          %s234 = scalar_lea.hbm %s1, %s233
          %s235 = smul.u32 16, %s225
          %s236 = sshll.u32 %s217, 4
          %s237 = int_to_ptr.vmem [resolvable:$true] %s236
          %s238 = sshll.u32 %s235, 4
          %242 = dma.hbm_to_vmem [thread:$0]  (%p231), %s234, %s238, %s237, %s214, 256, 256, 16
        $region24: #{tpu_custom_call.1} parent=15 // pred_fallthru
          _
        // Predicated region
        $region25: #{tpu_custom_call.1} parent=15 // pred_check
          %p243 = pneg %p126
        $region26: #{tpu_custom_call.1} parent=15 // pred_check_branch
          %245 = sbr.rel (%p243) target = $region28
        $region27: #{tpu_custom_call.1} parent=15 // pred_region
          %s246 = sand.u32 %s18, 1
          %s247 = scalar_lea.sflag [#allocation7], %s246
          %s248 = sand.u32 %s116, 1
          %s249 = smul.addr %s248, 32
          %s250 = scalar_lea.vmem [#allocation8], %s249
          %s251 = smul.u32 %s25, 2
          %s252 = sadd.s32 %s251, %s26
          %p253 = scmp.lt.s32.totalorder %s252, 2
          %s254 = scalar_select %p253, %s252, 2
          %s255 = smul.u32 2, %s254
          %s256 = ssub.s32 5, %s255
          %p257 = scmp.lt.s32.totalorder %s256, 2
          %s258 = scalar_select %p257, %s256, 2
          %s259 = smul.u32 128, %s258
          %s260 = smul.u32 %s259, 2
          %s262 = ssub.s32 512, %s260
          %263 = vsyncadd %s247, %s262
          %p264 = scmp.ne.s32.totalorder 0, %s260
          %s265 = smul.addr %s255, 2
          %s266 = smul.addr %s265, 128
          %s267 = scalar_lea.hbm %s2, %s266
          %s268 = smul.u32 16, %s258
          %s269 = sshll.u32 %s250, 4
          %s270 = int_to_ptr.vmem [resolvable:$true] %s269
          %s271 = sshll.u32 %s268, 4
          %275 = dma.hbm_to_vmem [thread:$0]  (%p264), %s267, %s271, %s270, %s247, 256, 256, 16
        $region28: #{tpu_custom_call.1} parent=15 // pred_fallthru
          _
      $region16: #{tpu_custom_call.1} parent=5 // pred_fallthru
        _
      %p276 = scmp.le.s32.totalorder 1, %s18
      %p277 = scmp.lt.s32.totalorder %s18, 5
      %p278 = pnand %p276, %p277
      %p279 = pneg %p278
      // Predicated region
      $region29: #{tpu_custom_call.1} parent=5 // pred_check
        _
      $region30: #{tpu_custom_call.1} parent=5 // pred_check_branch
        %281 = sbr.rel (%p278) target = $region32
      $region31: #{tpu_custom_call.1} parent=5 // pred_region
        %s282 = ssub.s32 %s18, 1
        %s283 = sand.u32 %s51, 1
        %s284 = scalar_lea.sflag [#allocation4], %s283
        %s285 = sand.u32 %s51, 1
        %s286 = smul.addr %s285, 32
        %s287 = scalar_lea.vmem [#allocation3], %s286
        // Predicated region
        $region33: #{tpu_custom_call.1} parent=31 // pred_check
          %p288 = pneg %p64
        $region34: #{tpu_custom_call.1} parent=31 // pred_check_branch
          %290 = sbr.rel (%p288) target = $region36
        $region35: #{tpu_custom_call.1} parent=31 // pred_region
          %291 = dma.done %s284, 512
        $region36: #{tpu_custom_call.1} parent=31 // pred_fallthru
          _
        %s292 = sand.u32 %s23, 1
        %s293 = scalar_lea.sflag [#allocation7], %s292
        %s294 = sand.u32 %s85, 1
        %s295 = smul.addr %s294, 32
        %s296 = scalar_lea.vmem [#allocation6], %s295
        // Predicated region
        $region37: #{tpu_custom_call.1} parent=31 // pred_check
          %p297 = pneg %p98
        $region38: #{tpu_custom_call.1} parent=31 // pred_check_branch
          %299 = sbr.rel (%p297) target = $region40
        $region39: #{tpu_custom_call.1} parent=31 // pred_region
          %300 = dma.done %s293, 512
        $region40: #{tpu_custom_call.1} parent=31 // pred_fallthru
          _
        %s301 = sand.u32 %s23, 1
        %s302 = scalar_lea.sflag [#allocation7], %s301
        %s303 = sand.u32 %s119, 1
        %s304 = smul.addr %s303, 32
        %s305 = scalar_lea.vmem [#allocation8], %s304
        // Predicated region
        $region41: #{tpu_custom_call.1} parent=31 // pred_check
          %p306 = pneg %p132
        $region42: #{tpu_custom_call.1} parent=31 // pred_check_branch
          %308 = sbr.rel (%p306) target = $region44
        $region43: #{tpu_custom_call.1} parent=31 // pred_region
          %309 = dma.done %s302, 512
        $region44: #{tpu_custom_call.1} parent=31 // pred_fallthru
          _
        %s310 = sand.u32 %s51, 1
        %s311 = scalar_lea.sflag [#allocation4], %s310
        %s312 = sand.u32 %s51, 1
        %s313 = smul.addr %s312, 32
        %s314 = scalar_lea.vmem [#allocation3], %s313
        %p315 = pneg %p64
        %p316 = pneg %p61
        %s317 = sand.u32 %s23, 1
        %s318 = scalar_lea.sflag [#allocation7], %s317
        %s319 = sand.u32 %s85, 1
        %s320 = smul.addr %s319, 32
        %s321 = scalar_lea.vmem [#allocation6], %s320
        %p322 = pneg %p98
        %p323 = pneg %p95
        %s324 = sand.u32 %s23, 1
        %s325 = scalar_lea.sflag [#allocation7], %s324
        %s326 = sand.u32 %s119, 1
        %s327 = smul.addr %s326, 32
        %s328 = scalar_lea.vmem [#allocation8], %s327
        %p329 = pneg %p132
        %p330 = pneg %p129
        %p331 = pneg %p158
        %p332 = pneg %p155
        %s333 = sand.u32 %s145, 1
        %s334 = scalar_lea.sflag [#allocation5], %s333
        %s335 = sand.u32 %s145, 1
        %s336 = smul.addr %s335, 8
        %s337 = scalar_lea.vmem [#allocation9], %s336
        %s338 = smul.u32 %s27, 2
        %s339 = sadd.s32 %s338, %s28
        %p340 = scmp.lt.s32.totalorder %s339, 2
        %s341 = scalar_select %p340, %s339, 2
        %s342 = smul.u32 2, %s341
        %s343 = ssub.s32 5, %s342
        %p344 = scmp.lt.s32.totalorder %s343, 2
        %s345 = scalar_select %p344, %s343, 2
        %s346 = smul.u32 128, %s345
        %s347 = smul.u32 %s346, 2
        %s348 = smul.u32 %s27, 2
        %s349 = sadd.s32 %s348, %s28
        %p350 = scmp.lt.s32.totalorder %s349, 2
        %s351 = scalar_select %p350, %s349, 2
        %s352 = smul.u32 2, %s351
        %s353 = ssub.s32 5, %s352
        %p354 = scmp.lt.s32.totalorder %s353, 2
        %s355 = scalar_select %p354, %s353, 2
        %s356 = smul.u32 128, %s355
        %s357 = smul.u32 %s356, 2
        %s358 = smul.u32 %s27, 2
        %s359 = sadd.s32 %s358, %s28
        %p360 = scmp.lt.s32.totalorder %s359, 2
        %s361 = scalar_select %p360, %s359, 2
        %s362 = smul.u32 2, %s361
        %s363 = ssub.s32 5, %s362
        %p364 = scmp.lt.s32.totalorder %s363, 2
        %s365 = scalar_select %p364, %s363, 2
        %s366 = smul.u32 128, %s365
        %s367 = smul.u32 %s366, 2
        %s368 = smul.u32 %s27, 2
        %s369 = sadd.s32 %s368, %s28
        %p370 = scmp.eq.s32.totalorder %s28, 0
        // Predicated region
        $region45: #{tpu_custom_call.1} parent=31 // pred_check
          %p371 = pneg %p370
        $region46: #{tpu_custom_call.1} parent=31 // pred_check_branch
          %373 = sbr.rel (%p371) target = $region48
        $region47: #{tpu_custom_call.1} parent=31 // pred_region
          %v374 = vlaneseq
          %vm375 = vcmp.ge.s32.totalorder %v374, 0
          %vm376 = vcmp.lt.s32.totalorder %v374, 256
          %vm377 = vmand %vm375, %vm376
          %378 = vst.msk [vmem:[#allocation2] sm:$0x3] %vm377, 0.0
        $region48: #{tpu_custom_call.1} parent=31 // pred_fallthru
          _
        %p379 = scmp.lt.s32.totalorder %s369, 2
        // Predicated region
        $region49: #{tpu_custom_call.1} parent=31 // pred_check
          %p380 = pneg %p379
        $region50: #{tpu_custom_call.1} parent=31 // pred_check_branch
          %382 = sbr.rel (%p380) target = $region52
        $region51: #{tpu_custom_call.1} parent=31 // pred_region
          %v383 = vld [vmem:[%s287] sm:$0xff]
          %v384 = vld [vmem:[%s287 + $0x8] sm:$0xff]
          %v385 = vld [vmem:[%s287 + $0x10] sm:$0xff]
          %v386 = vld [vmem:[%s287 + $0x18] sm:$0xff]
          %v387 = vmul.f32 %v383, %v383
          %v388 = vmul.f32 %v384, %v384
          %v389 = vmul.f32 %v385, %v385
          %v390 = vmul.f32 %v386, %v386
          %v391 = vand.u32 2147483647, %v383
          %v392 = vand.u32 2147483647, %v384
          %v393 = vand.u32 2147483647, %v385
          %v394 = vand.u32 2147483647, %v386
          %v395 = vmul.f32 %v387, %v391
          %v396 = vmul.f32 %v388, %v392
          %v397 = vmul.f32 %v389, %v393
          %v398 = vmul.f32 %v390, %v394
          %v399 = vadd.f32 %v395, %v397
          %v400 = vrot.slane %v399, 4
          %v401 = vadd.f32 %v399, %v400
          %v402 = vrot.slane %v401, 2
          %v403 = vadd.f32 %v401, %v402
          %v404 = vrot.slane %v403, 1
          %v405 = vadd.f32 %v403, %v404
          %v406 = vadd.f32 %v396, %v398
          %v407 = vrot.slane %v406, 4
          %v408 = vadd.f32 %v406, %v407
          %v409 = vrot.slane %v408, 2
          %v410 = vadd.f32 %v408, %v409
          %v411 = vrot.slane %v410, 1
          %v412 = vadd.f32 %v410, %v411
          %v413 = vadd.f32 %v405, 0.0
          %v414 = vadd.f32 %v412, 0.0
          %v415 = vld [vmem:[%s296] sm:$0xff]
          %v416 = vld [vmem:[%s296 + $0x8] sm:$0xff]
          %v417 = vld [vmem:[%s296 + $0x10] sm:$0xff]
          %v418 = vld [vmem:[%s296 + $0x18] sm:$0xff]
          %v419 = vmul.f32 %v415, %v415
          %v420 = vmul.f32 %v416, %v416
          %v421 = vmul.f32 %v417, %v417
          %v422 = vmul.f32 %v418, %v418
          %v423 = vand.u32 2147483647, %v415
          %v424 = vand.u32 2147483647, %v416
          %v425 = vand.u32 2147483647, %v417
          %v426 = vand.u32 2147483647, %v418
          %v427 = vmul.f32 %v419, %v423
          %v428 = vmul.f32 %v420, %v424
          %v429 = vmul.f32 %v421, %v425
          %v430 = vmul.f32 %v422, %v426
          %v431 = vadd.f32 %v427, %v429
          %v432 = vrot.slane %v431, 4
          %v433 = vadd.f32 %v431, %v432
          %v434 = vrot.slane %v433, 2
          %v435 = vadd.f32 %v433, %v434
          %v436 = vrot.slane %v435, 1
          %v437 = vadd.f32 %v435, %v436
          %v438 = vadd.f32 %v428, %v430
          %v439 = vrot.slane %v438, 4
          %v440 = vadd.f32 %v438, %v439
          %v441 = vrot.slane %v440, 2
          %v442 = vadd.f32 %v440, %v441
          %v443 = vrot.slane %v442, 1
          %v444 = vadd.f32 %v442, %v443
          %v445 = vadd.f32 %v413, %v437
          %v446 = vadd.f32 %v414, %v444
          %v447 = vld [vmem:[%s305] sm:$0xff]
          %v448 = vld [vmem:[%s305 + $0x8] sm:$0xff]
          %v449 = vld [vmem:[%s305 + $0x10] sm:$0xff]
          %v450 = vld [vmem:[%s305 + $0x18] sm:$0xff]
          %v451 = vmul.f32 %v447, %v447
          %v452 = vmul.f32 %v448, %v448
          %v453 = vmul.f32 %v449, %v449
          %v454 = vmul.f32 %v450, %v450
          %v455 = vand.u32 2147483647, %v447
          %v456 = vand.u32 2147483647, %v448
          %v457 = vand.u32 2147483647, %v449
          %v458 = vand.u32 2147483647, %v450
          %v459 = vmul.f32 %v451, %v455
          %v460 = vmul.f32 %v452, %v456
          %v461 = vmul.f32 %v453, %v457
          %v462 = vmul.f32 %v454, %v458
          %v463 = vadd.f32 %v459, %v461
          %v464 = vrot.slane %v463, 4
          %v465 = vadd.f32 %v463, %v464
          %v466 = vrot.slane %v465, 2
          %v467 = vadd.f32 %v465, %v466
          %v468 = vrot.slane %v467, 1
          %v469 = vadd.f32 %v467, %v468
          %v470 = vadd.f32 %v460, %v462
          %v471 = vrot.slane %v470, 4
          %v472 = vadd.f32 %v470, %v471
          %v473 = vrot.slane %v472, 2
          %v474 = vadd.f32 %v472, %v473
          %v475 = vrot.slane %v474, 1
          %v476 = vadd.f32 %v474, %v475
          %v477 = vadd.f32 %v445, %v469
          %v478 = vadd.f32 %v446, %v476
          %v479 = vld [vmem:[#allocation2] sm:$0x3]
          %v482 = vcombine.low %v477, %v478
          %v484 = vunpack.c.l.s4 1966171168
          %v485 = vunpack.c.0.s8 %v484
          %v486 = vlaneseq
          %v487 = vshrl.u32 %v486, 7
          %v488 = vsub.s32 %v485, %v487
          %v489 = vrot.slane %v482, %v488
          %v491 = vunpack.c.l.s4 1966171168
          %v492 = vunpack.c.0.s8 %v491
          %v493 = vlaneseq
          %v494 = vshrl.u32 %v493, 7
          %v495 = vsub.s32 %v492, %v494
          %v496 = vrot.slane %v489, %v495
          %v498 = vadd.f32 %v479, %v496
          %v499 = vlaneseq
          %vm500 = vcmp.ge.s32.totalorder %v499, 0
          %vm501 = vcmp.lt.s32.totalorder %v499, 256
          %vm502 = vmand %vm500, %vm501
          %503 = vst.msk [vmem:[#allocation2] sm:$0x3] %vm502, %v498
        $region52: #{tpu_custom_call.1} parent=31 // pred_fallthru
          _
        %p504 = scmp.eq.s32.totalorder %s369, 2
        // Predicated region
        $region53: #{tpu_custom_call.1} parent=31 // pred_check
          %p505 = pneg %p504
        $region54: #{tpu_custom_call.1} parent=31 // pred_check_branch
          %507 = sbr.rel (%p505) target = $region56
        $region55: #{tpu_custom_call.1} parent=31 // pred_region
          %s508 = smul.u32 %s369, 16
          %v509 = vlaneseq
          %v510 = vshrl.u32 %v509, 7
          %v511 = vadd.s32 %v510, 8
          %v512 = vstv %s508
          %v513 = vadd.s32 %v512, %v510
          %v514 = vadd.s32 %v512, %v511
          %vm515 = vcmp.lt.s32.totalorder %v513, 40
          %vm516 = vcmp.lt.s32.totalorder %v514, 40
          %v517 = vld [vmem:[%s287] sm:$0xff]
          %v518 = vld [vmem:[%s287 + $0x8] sm:$0xff]
          %v519 = vld [vmem:[%s287 + $0x10] sm:$0xff]
          %v520 = vld [vmem:[%s287 + $0x18] sm:$0xff]
          %v521 = vmul.f32 %v517, %v517
          %v522 = vmul.f32 %v518, %v518
          %v523 = vmul.f32 %v519, %v519
          %v524 = vmul.f32 %v520, %v520
          %v525 = vand.u32 2147483647, %v517
          %v526 = vand.u32 2147483647, %v518
          %v527 = vand.u32 2147483647, %v519
          %v528 = vand.u32 2147483647, %v520
          %v529 = vmul.f32 %v521, %v525
          %v530 = vmul.f32 %v522, %v526
          %v531 = vmul.f32 %v523, %v527
          %v532 = vmul.f32 %v524, %v528
          %v533 = vsel %vm515, 1, 0
          %v534 = vsel %vm516, 1, 0
          %vm535 = vcmp.eq.s32.totalorder %v533, 1
          %vm536 = vcmp.eq.s32.totalorder %v534, 1
          %v537 = vsel %vm535, %v529, 0.0
          %v538 = vsel %vm535, %v530, 0.0
          %v539 = vsel %vm536, %v531, 0.0
          %v540 = vsel %vm536, %v532, 0.0
          %v541 = vadd.f32 %v537, %v539
          %v542 = vrot.slane %v541, 4
          %v543 = vadd.f32 %v541, %v542
          %v544 = vrot.slane %v543, 2
          %v545 = vadd.f32 %v543, %v544
          %v546 = vrot.slane %v545, 1
          %v547 = vadd.f32 %v545, %v546
          %v548 = vadd.f32 %v538, %v540
          %v549 = vrot.slane %v548, 4
          %v550 = vadd.f32 %v548, %v549
          %v551 = vrot.slane %v550, 2
          %v552 = vadd.f32 %v550, %v551
          %v553 = vrot.slane %v552, 1
          %v554 = vadd.f32 %v552, %v553
          %v555 = vadd.f32 %v547, 0.0
          %v556 = vadd.f32 %v554, 0.0
          %v557 = vld [vmem:[%s296] sm:$0xff]
          %v558 = vld [vmem:[%s296 + $0x8] sm:$0xff]
          %v559 = vld [vmem:[%s296 + $0x10] sm:$0xff]
          %v560 = vld [vmem:[%s296 + $0x18] sm:$0xff]
          %v561 = vmul.f32 %v557, %v557
          %v562 = vmul.f32 %v558, %v558
          %v563 = vmul.f32 %v559, %v559
          %v564 = vmul.f32 %v560, %v560
          %v565 = vand.u32 2147483647, %v557
          %v566 = vand.u32 2147483647, %v558
          %v567 = vand.u32 2147483647, %v559
          %v568 = vand.u32 2147483647, %v560
          %v569 = vmul.f32 %v561, %v565
          %v570 = vmul.f32 %v562, %v566
          %v571 = vmul.f32 %v563, %v567
          %v572 = vmul.f32 %v564, %v568
          %v573 = vsel %vm535, %v569, 0.0
          %v574 = vsel %vm535, %v570, 0.0
          %v575 = vsel %vm536, %v571, 0.0
          %v576 = vsel %vm536, %v572, 0.0
          %v577 = vadd.f32 %v573, %v575
          %v578 = vrot.slane %v577, 4
          %v579 = vadd.f32 %v577, %v578
          %v580 = vrot.slane %v579, 2
          %v581 = vadd.f32 %v579, %v580
          %v582 = vrot.slane %v581, 1
          %v583 = vadd.f32 %v581, %v582
          %v584 = vadd.f32 %v574, %v576
          %v585 = vrot.slane %v584, 4
          %v586 = vadd.f32 %v584, %v585
          %v587 = vrot.slane %v586, 2
          %v588 = vadd.f32 %v586, %v587
          %v589 = vrot.slane %v588, 1
          %v590 = vadd.f32 %v588, %v589
          %v591 = vadd.f32 %v555, %v583
          %v592 = vadd.f32 %v556, %v590
          %v593 = vld [vmem:[%s305] sm:$0xff]
          %v594 = vld [vmem:[%s305 + $0x8] sm:$0xff]
          %v595 = vld [vmem:[%s305 + $0x10] sm:$0xff]
          %v596 = vld [vmem:[%s305 + $0x18] sm:$0xff]
          %v597 = vmul.f32 %v593, %v593
          %v598 = vmul.f32 %v594, %v594
          %v599 = vmul.f32 %v595, %v595
          %v600 = vmul.f32 %v596, %v596
          %v601 = vand.u32 2147483647, %v593
          %v602 = vand.u32 2147483647, %v594
          %v603 = vand.u32 2147483647, %v595
          %v604 = vand.u32 2147483647, %v596
          %v605 = vmul.f32 %v597, %v601
          %v606 = vmul.f32 %v598, %v602
          %v607 = vmul.f32 %v599, %v603
          %v608 = vmul.f32 %v600, %v604
          %v609 = vsel %vm535, %v605, 0.0
          %v610 = vsel %vm535, %v606, 0.0
          %v611 = vsel %vm536, %v607, 0.0
          %v612 = vsel %vm536, %v608, 0.0
          %v613 = vadd.f32 %v609, %v611
          %v614 = vrot.slane %v613, 4
          %v615 = vadd.f32 %v613, %v614
          %v616 = vrot.slane %v615, 2
          %v617 = vadd.f32 %v615, %v616
          %v618 = vrot.slane %v617, 1
          %v619 = vadd.f32 %v617, %v618
          %v620 = vadd.f32 %v610, %v612
          %v621 = vrot.slane %v620, 4
          %v622 = vadd.f32 %v620, %v621
          %v623 = vrot.slane %v622, 2
          %v624 = vadd.f32 %v622, %v623
          %v625 = vrot.slane %v624, 1
          %v626 = vadd.f32 %v624, %v625
          %v627 = vadd.f32 %v591, %v619
          %v628 = vadd.f32 %v592, %v626
          %v629 = vld [vmem:[#allocation2] sm:$0x3]
          %v632 = vcombine.low %v627, %v628
          %v634 = vunpack.c.l.s4 1966171168
          %v635 = vunpack.c.0.s8 %v634
          %v636 = vlaneseq
          %v637 = vshrl.u32 %v636, 7
          %v638 = vsub.s32 %v635, %v637
          %v639 = vrot.slane %v632, %v638
          %v641 = vunpack.c.l.s4 1966171168
          %v642 = vunpack.c.0.s8 %v641
          %v643 = vlaneseq
          %v644 = vshrl.u32 %v643, 7
          %v645 = vsub.s32 %v642, %v644
          %v646 = vrot.slane %v639, %v645
          %v648 = vadd.f32 %v629, %v646
          %v649 = vlaneseq
          %vm650 = vcmp.ge.s32.totalorder %v649, 0
          %vm651 = vcmp.lt.s32.totalorder %v649, 256
          %vm652 = vmand %vm650, %vm651
          %653 = vst.msk [vmem:[#allocation2] sm:$0x3] %vm652, %v648
        $region56: #{tpu_custom_call.1} parent=31 // pred_fallthru
          _
        %p654 = scmp.eq.s32.totalorder %s28, 1
        // Predicated region
        $region57: #{tpu_custom_call.1} parent=31 // pred_check
          %p655 = pneg %p654
        $region58: #{tpu_custom_call.1} parent=31 // pred_check_branch
          %657 = sbr.rel (%p655) target = $region60
        $region59: #{tpu_custom_call.1} parent=31 // pred_region
          %v658 = vld [vmem:[#allocation2] sm:$0x3]
          %v660 = vlaneseq
          %v661 = vshrl.u32 %v660, 7
          %v662 = vsub.s32 0, %v661
          %v663 = vrot.slane %v658, %v662
          %v664 = vlaneseq
          %v665 = vshrl.u32 %v664, 7
          %v666 = vsub.s32 1, %v665
          %v667 = vrot.slane %v658, %v666
          %vm670 = vcmask 1040384
          %v671 = vsel %vm670, %v663, 0.0
          %v672 = vsel %vm670, %v667, 0.0
          %v673 = vadd.f32 %v671, %v672
          %674 = vadd.xlane.f32.xlu0 %v673
          %v675 = vpop.xlane.xlu0 %674
          %v676 = vrot.slane %v675, 4
          %v677 = vadd.f32 %v675, %v676
          %v678 = vrot.slane %v677, 2
          %v679 = vadd.f32 %v677, %v678
          %v680 = vrot.slane %v679, 1
          %v681 = vadd.f32 %v679, %v680
          %s682 = vtos %v681
          %s683 = smul.f32 %s682, 0.00025
          %v684 = vstv %s683
          %685 = vst [vmem:[%s337] sm:$0xff] %v684
        $region60: #{tpu_custom_call.1} parent=31 // pred_fallthru
          _
        %s686 = sand.u32 %s145, 1
        %s687 = scalar_lea.sflag [#allocation5], %s686
        %s688 = sand.u32 %s145, 1
        %s689 = smul.addr %s688, 8
        %s690 = scalar_lea.vmem [#allocation9], %s689
        // Predicated region
        $region61: #{tpu_custom_call.1} parent=31 // pred_check
          %p691 = pneg %p155
        $region62: #{tpu_custom_call.1} parent=31 // pred_check_branch
          %693 = sbr.rel (%p691) target = $region64
        $region63: #{tpu_custom_call.1} parent=31 // pred_region
          %s695 = ssub.s32 128, 128
          %696 = vsyncadd %s687, %s695
          %s697 = smul.addr %s27, 128
          %s698 = scalar_lea.hbm %s3, %s697
          %s700 = sshll.u32 %s690, 4
          %s701 = int_to_ptr.vmem [resolvable:$true] %s700
          %703 = dma.vmem_to_hbm [thread:$0]  %s701, 128, %s698, %s687
        $region64: #{tpu_custom_call.1} parent=31 // pred_fallthru
          _
      $region32: #{tpu_custom_call.1} parent=5 // pred_fallthru
        _
      %p704 = scmp.le.s32.totalorder 2, %s18
      // Predicated region
      $region65: #{tpu_custom_call.1} parent=5 // pred_check
        %p705 = pneg %p704
      $region66: #{tpu_custom_call.1} parent=5 // pred_check_branch
        %707 = sbr.rel (%p705) target = $region68
      $region67: #{tpu_custom_call.1} parent=5 // pred_region
        %s708 = ssub.s32 %s18, 2
        // Predicated region
        $region69: #{tpu_custom_call.1} parent=67 // pred_check
          %p709 = pneg %p161
        $region70: #{tpu_custom_call.1} parent=67 // pred_check_branch
          %711 = sbr.rel (%p709) target = $region72
        $region71: #{tpu_custom_call.1} parent=67 // pred_region
          %s712 = sand.u32 %s146, 1
          %s713 = scalar_lea.sflag [#allocation5], %s712
          %s714 = sand.u32 %s146, 1
          %s715 = smul.addr %s714, 8
          %s716 = scalar_lea.vmem [#allocation9], %s715
          %717 = dma.done %s713, 128
        $region72: #{tpu_custom_call.1} parent=67 // pred_fallthru
          _
      $region68: #{tpu_custom_call.1} parent=5 // pred_fallthru
        _
    $region6: #{tpu_custom_call.1} parent=1 // loop_footer
      %s22 = sadd.s32 1, %s18
    $region7: #{tpu_custom_call.1} parent=1 // loop_footer_branch
      %17 = sbr.rel target = $region3
    $region8: #{tpu_custom_call.1} parent=1 // loop_exit
      _
    %718 = vsyncpa [#allocation4], 1
    %s719 = scalar_lea.sflag [#allocation4], 1
    %720 = vsyncpa %s719, 1
    %721 = vsyncpa [#allocation7], 1
    %s722 = scalar_lea.sflag [#allocation7], 1
    %723 = vsyncpa %s722, 1
    %724 = vsyncpa [#allocation5], 1
    %s725 = scalar_lea.sflag [#allocation5], 1
    %726 = vsyncpa %s725, 1

</llo_original>
